<compile_context>
chip_gen: v7x
topology: tpu7x:2x2x1
jax: 0.10.0
libtpu: 0.0.40
codegen_flags: <defaults>
</compile_context>

<pallas_src>
import math

import jax
import jax.numpy as jnp
from jax.experimental import pallas as pl
from jax.experimental.pallas import tpu as pltpu


def make_pe_buffer(d_model: int, max_len: int) -> jnp.ndarray:
    """Deterministic sinusoidal positional-encoding table, shape (max_len, 1, d_model)."""
    position = jnp.arange(max_len, dtype=jnp.float32)[:, None]                  # (max_len, 1)
    div_term = jnp.exp(jnp.arange(0, d_model, 2, dtype=jnp.float32)
                       * (-math.log(10000.0) / d_model))                         # (d_model/2,)
    pe = jnp.zeros((max_len, d_model), dtype=jnp.float32)
    pe = pe.at[:, 0::2].set(jnp.sin(position * div_term))
    pe = pe.at[:, 1::2].set(jnp.cos(position * div_term))
    return pe[:, None, :]                                                        # (max_len, 1, d_model)


# ---------------------------------------------------------------------------
# Kernels: pure streaming elementwise ops on lane-dense 2-D blocks.
# ---------------------------------------------------------------------------

def _add_pe_kernel(x_ref, pe_ref, o_ref):
    # x_ref / pe_ref / o_ref: (TILE_S, B*D) VMEM tiles.
    o_ref[...] = x_ref[...] + pe_ref[...]


def _add_pe_dropout_kernel(x_ref, pe_ref, mask_ref, o_ref):
    # mask_ref holds 0 or 1/(1-p) (inverted dropout), same dtype/layout as x.
    o_ref[...] = (x_ref[...] + pe_ref[...]) * mask_ref[...]


# ---------------------------------------------------------------------------
# Wrapper
# ---------------------------------------------------------------------------

_TARGET_BLOCK_BYTES = 2 * 1024 * 1024   # ~2 MiB per input block


def _choose_row_tile(num_rows: int, row_bytes: int) -> int:
    """Largest row tile <= ~2 MiB that is either the full extent or a multiple of 8."""
    if num_rows * row_bytes <= _TARGET_BLOCK_BYTES:
        return num_rows
    tile = (_TARGET_BLOCK_BYTES // max(row_bytes, 1)) // 8 * 8
    return max(8, min(tile, num_rows))


def positional_encoding(x, pe, *, dropout_p=0.1, training=False, rng_key=None):
    """x: (S, B, D); pe: (max_len, 1, D).  Returns dropout(x + pe[:S])."""
    S, B, D = x.shape
    C = B * D

    # Lane-dense 2-D views: (S, B*D).  pe is tiny, broadcast it across batch in the
    # wrapper so the in-kernel add is a plain aligned vreg add (no stride-0 broadcast).
    x2 = x.reshape(S, C)
    pe2 = jnp.broadcast_to(pe[:S].astype(x.dtype), (S, B, D)).reshape(S, C)

    tile_s = _choose_row_tile(S, C * x.dtype.itemsize)
    grid = (pl.cdiv(S, tile_s),)
    spec = pl.BlockSpec((tile_s, C), lambda i: (i, 0))

    compiler_params = pltpu.CompilerParams(dimension_semantics=("parallel",))

    if training and dropout_p > 0.0:
        if dropout_p >= 1.0:
            return jnp.zeros_like(x)
        if rng_key is None:
            rng_key = jax.random.PRNGKey(0)
        keep = jax.random.bernoulli(rng_key, 1.0 - dropout_p, (S, C))
        mask2 = keep.astype(x.dtype) * jnp.asarray(1.0 / (1.0 - dropout_p), x.dtype)

        out2 = pl.pallas_call(
            _add_pe_dropout_kernel,
            grid_spec=pl.GridSpec(grid=grid,
                                  in_specs=[spec, spec, spec],
                                  out_specs=spec),
            out_shape=jax.ShapeDtypeStruct((S, C), x.dtype),
            compiler_params=compiler_params,
        )(x2, pe2, mask2)
    else:
        out2 = pl.pallas_call(
            _add_pe_kernel,
            grid_spec=pl.GridSpec(grid=grid,
                                  in_specs=[spec, spec],
                                  out_specs=spec),
            out_shape=jax.ShapeDtypeStruct((S, C), x.dtype),
            compiler_params=compiler_params,
        )(x2, pe2)

    return out2.reshape(S, B, D)


if __name__ == "__main__":
    d_model = 32
    max_len = 64
    seq_len = 8
    batch = 2

    key = jax.random.PRNGKey(0)
    k_x, k_drop = jax.random.split(key)
    x = jax.random.normal(k_x, (seq_len, batch, d_model), dtype=jnp.float32)
    pe = make_pe_buffer(d_model, max_len)

    # Eval-mode forward (dropout == identity), matches PyTorch module.eval().
    out = positional_encoding(x, pe, dropout_p=0.1, training=False)
    out = jax.block_until_ready(out)

    ref = x + pe[:seq_len]
    assert out.shape == ref.shape
    assert jnp.allclose(out, ref, atol=1e-6), "mismatch vs reference (eval mode)"

    # Training-mode forward (inverted dropout, host-generated mask) -- exercise it.
    p = 0.1
    out_train = positional_encoding(x, pe, dropout_p=p, training=True, rng_key=k_drop)
    out_train = jax.block_until_ready(out_train)
    assert out_train.shape == ref.shape
    assert bool(jnp.all(jnp.isfinite(out_train)))
    # Every surviving element must equal (x + pe) / (1 - p); dropped elements are 0.
    kept = out_train != 0
    assert bool(jnp.all(jnp.where(kept,
                                  jnp.abs(out_train - ref / (1.0 - p)) < 1e-5,
                                  True)))

    print("KERNEL_OK")
</pallas_src>

<mosaic_0001>
module attributes {stable_mosaic.version = 11 : i64} {
  func.func @_add_pe_kernel(%arg0: i32, %arg1: memref<8x64xf32, #tpu.memory_space<vmem>>, %arg2: memref<8x64xf32, #tpu.memory_space<vmem>>, %arg3: memref<8x64xf32, #tpu.memory_space<vmem>>) attributes {dimension_semantics = [#tpu.dimension_semantics<parallel>], iteration_bounds = array<i64: 1>, scalar_prefetch = 0 : i64, scratch_operands = 0 : i64, tpu.core_type = #tpu.core_type<tc>, window_params = [{transform_indices = @transform_0, window_bounds = array<i64: 8, 64>}, {transform_indices = @transform_1, window_bounds = array<i64: 8, 64>}, {transform_indices = @transform_2, window_bounds = array<i64: 8, 64>}]} {
    %c0 = arith.constant 0 : index
    %c0_0 = arith.constant 0 : index
    %0 = vector.load %arg1[%c0, %c0_0] : memref<8x64xf32, #tpu.memory_space<vmem>>, vector<8x64xf32>
    %c0_1 = arith.constant 0 : index
    %c0_2 = arith.constant 0 : index
    %1 = vector.load %arg2[%c0_1, %c0_2] : memref<8x64xf32, #tpu.memory_space<vmem>>, vector<8x64xf32>
    %2 = arith.addf %0, %1 : vector<8x64xf32>
    %c0_3 = arith.constant 0 : index
    %c0_4 = arith.constant 0 : index
    %3 = vector.load %arg3[%c0_3, %c0_4] : memref<8x64xf32, #tpu.memory_space<vmem>>, vector<8x64xf32>
    tpu.vector_store %arg3[%c0_3, %c0_4], %2 {strides = array<i32>} : memref<8x64xf32, #tpu.memory_space<vmem>>, vector<8x64xf32>,
    return
  }
  func.func @transform_0(%arg0: i32) -> (i32, i32) {
    %c0_i32 = arith.constant 0 : i32
    %c0_i32_0 = arith.constant 0 : i32
    return %arg0, %c0_i32 : i32, i32
  }
  func.func @transform_1(%arg0: i32) -> (i32, i32) {
    %c0_i32 = arith.constant 0 : i32
    %c0_i32_0 = arith.constant 0 : i32
    return %arg0, %c0_i32 : i32, i32
  }
  func.func @transform_2(%arg0: i32) -> (i32, i32) {
    %c0_i32 = arith.constant 0 : i32
    %c0_i32_0 = arith.constant 0 : i32
    return %arg0, %c0_i32 : i32, i32
  }
}

</mosaic_0001>

<llo_original>
// kernel: tpu_custom_call.1
$region0: #{tpu_custom_call.1}
  #allocation0 [shape = 'u32[]', space=smem, size = 0x4, offset = 0x4, fixed_abs, tag = 'smem constant byte address 0x4 - core index']
  #allocation1 [shape = 'u32[144,128]{1,0:T(1,128)}', space=vmem, size = 0x12000, scoped, tag = 'internal scratch']
  %s0 = inlined_call_operand.hbm [shape: f32[8,64], index: 0, kind: input, shape index: {}]
  %s1 = inlined_call_operand.hbm [shape: f32[8,64], index: 1, kind: input, shape index: {}]
  %s2 = inlined_call_operand.hbm [shape: f32[8,64], index: 2, kind: output, shape index: {}]
  %s3 = sld [smem:[#allocation0]]
  $region26: #{tpu_custom_call.1} parent=0
    _
  %s5 = ssub.s32 1, %s3
  %s6 = scalar_select 0, %s5, %s3
  $region1: #{tpu_custom_call.1} parent=0
    #allocation2 [shape = 'u8[4096]{0}', space=vmem, size = 0x1000, scoped, tag = 'input window, operand 0, single buffered']
    #allocation3 [shape = 's32[1]{0}', space=sflag, size = 0x4, scoped, tag = 'scoped memory for tpu_custom_call.1']
    #allocation4 [shape = 's32[1]{0}', space=sflag, size = 0x4, scoped, tag = 'scoped memory for tpu_custom_call.1']
    #allocation5 [shape = 'u8[4096]{0}', space=vmem, size = 0x1000, scoped, tag = 'input window, operand 1, single buffered']
    #allocation6 [shape = 's32[1]{0}', space=sflag, size = 0x4, scoped, tag = 'scoped memory for tpu_custom_call.1']
    #allocation7 [shape = 'u8[4096]{0}', space=vmem, size = 0x1000, scoped, tag = 'output window, operand 0, single buffered']
    %7 = vsyncpa [#allocation3], 0
    %8 = vsyncpa [#allocation6], 0
    %9 = vsyncpa [#allocation4], 0
    // Predicated region
    $region2: #{tpu_custom_call.1} parent=1 // pred_check
      _
    $region3: #{tpu_custom_call.1} parent=1 // pred_check_branch
      %11 = sbr.rel (0) target = $region5
    $region4: #{tpu_custom_call.1} parent=1 // pred_region
      %s13 = ssub.s32 128, 128
      %14 = vsyncadd [#allocation3], %s13
      %s16 = sshll.u32 [#allocation2], 4
      %s17 = int_to_ptr.vmem [resolvable:$true] %s16
      %19 = dma.hbm_to_vmem [thread:$0]  %s0, 128, %s17, [#allocation3]
    $region5: #{tpu_custom_call.1} parent=1 // pred_fallthru
      _
    // Predicated region
    $region6: #{tpu_custom_call.1} parent=1 // pred_check
      _
    $region7: #{tpu_custom_call.1} parent=1 // pred_check_branch
      %21 = sbr.rel (0) target = $region9
    $region8: #{tpu_custom_call.1} parent=1 // pred_region
      %s23 = ssub.s32 128, 128
      %24 = vsyncadd [#allocation6], %s23
      %s26 = sshll.u32 [#allocation5], 4
      %s27 = int_to_ptr.vmem [resolvable:$true] %s26
      %29 = dma.hbm_to_vmem [thread:$0]  %s1, 128, %s27, [#allocation6]
    $region9: #{tpu_custom_call.1} parent=1 // pred_fallthru
      _
    // Predicated region
    $region10: #{tpu_custom_call.1} parent=1 // pred_check
      _
    $region11: #{tpu_custom_call.1} parent=1 // pred_check_branch
      %31 = sbr.rel (0) target = $region13
    $region12: #{tpu_custom_call.1} parent=1 // pred_region
      %32 = dma.done [#allocation3], 128
    $region13: #{tpu_custom_call.1} parent=1 // pred_fallthru
      _
    // Predicated region
    $region14: #{tpu_custom_call.1} parent=1 // pred_check
      _
    $region15: #{tpu_custom_call.1} parent=1 // pred_check_branch
      %34 = sbr.rel (0) target = $region17
    $region16: #{tpu_custom_call.1} parent=1 // pred_region
      %35 = dma.done [#allocation6], 128
    $region17: #{tpu_custom_call.1} parent=1 // pred_fallthru
      _
    %v36 = vld [vmem:[#allocation2] sm:$0xff]
    %v37 = vld [vmem:[#allocation5] sm:$0xff]
    %v38 = vadd.f32 %v36, %v37
    %vm39 = vcmask 523264
    %40 = vst.msk [vmem:[#allocation7] sm:$0xff] %vm39, %v38
    // Predicated region
    $region18: #{tpu_custom_call.1} parent=1 // pred_check
      _
    $region19: #{tpu_custom_call.1} parent=1 // pred_check_branch
      %42 = sbr.rel (0) target = $region21
    $region20: #{tpu_custom_call.1} parent=1 // pred_region
      %s44 = ssub.s32 128, 128
      %45 = vsyncadd [#allocation4], %s44
      %s47 = sshll.u32 [#allocation7], 4
      %s48 = int_to_ptr.vmem [resolvable:$true] %s47
      %50 = dma.vmem_to_hbm [thread:$0]  %s48, 128, %s2, [#allocation4]
    $region21: #{tpu_custom_call.1} parent=1 // pred_fallthru
      _
    // Predicated region
    $region22: #{tpu_custom_call.1} parent=1 // pred_check
      _
    $region23: #{tpu_custom_call.1} parent=1 // pred_check_branch
      %52 = sbr.rel (0) target = $region25
    $region24: #{tpu_custom_call.1} parent=1 // pred_region
      %53 = dma.done [#allocation4], 128
    $region25: #{tpu_custom_call.1} parent=1 // pred_fallthru
      _
    %54 = vsyncpa [#allocation3], 1
    %55 = vsyncpa [#allocation6], 1
    %56 = vsyncpa [#allocation4], 1

</llo_original>
